<compile_context>
chip_gen: v7x
topology: tpu7x:2x2x1
jax: 0.10.0
libtpu: 0.0.40
codegen_flags: <defaults>
</compile_context>

<pallas_src>
import functools
import math

import jax
import jax.numpy as jnp
from jax import lax
from jax.experimental import pallas as pl
from jax.experimental.pallas import tpu as pltpu

CHUNK = 512  # lanes per inner step: keeps h1/h2 (+ bf16 copies) vreg-resident


def mlp_kernel(xT_ref, w1_ref, b1_ref, w2_ref, b2_ref, w3_ref, b3_ref, o_ref):
    """Forward for one (features, TILE_B) batch tile, chunked along lanes."""
    w1 = w1_ref[...]                      # (64, 4)   bf16
    b1 = b1_ref[...]                      # (64, 1)   f32
    w2 = w2_ref[...]                      # (32, 64)  bf16
    b2 = b2_ref[...]                      # (32, 1)   f32
    w3 = w3_ref[...]                      # (32, 1)   f32 (head weights, column)
    b3 = b3_ref[...]                      # (1, 1)    f32

    n_chunks = xT_ref.shape[-1] // CHUNK

    def body(c, carry):
        start = pl.multiple_of(c * CHUNK, CHUNK)
        xT = xT_ref[:, pl.ds(start, CHUNK)]                              # (4, CHUNK) bf16

        # layer 1: Linear(4 -> 64); bias in f32, cast, ReLU in bf16 (same math).
        h1 = jnp.dot(w1, xT, preferred_element_type=jnp.float32) + b1   # (64, CHUNK) f32
        h1 = jnp.maximum(h1.astype(jnp.bfloat16), 0)

        # layer 2: Linear(64 -> 32)
        h2 = jnp.dot(w2, h1, preferred_element_type=jnp.float32) + b2   # (32, CHUNK) f32
        h2 = jnp.maximum(h2.astype(jnp.bfloat16), 0)

        # head: Linear(32 -> 1).  Degenerate MXU shape -> VPU multiply + XLU reduce.
        out = jnp.sum(w3 * h2.astype(jnp.float32), axis=0, keepdims=True) + b3  # (1, CHUNK)

        o_ref[:, pl.ds(start, CHUNK)] = out.astype(o_ref.dtype)
        return carry

    lax.fori_loop(0, n_chunks, body, 0, unroll=True)


def _cdiv(a, b):
    return (a + b - 1) // b


@functools.partial(jax.jit, static_argnames=("tile_b",))
def burnout_predictor_forward(x, params, tile_b=8192):
    """x: (B, input_size) float32. params: (w1,b1,w2,b2,w3,b3), PyTorch layout:
    w_i is (out_i, in_i), b_i is (out_i, 1). Returns (B, 1) float32."""
    w1, b1, w2, b2, w3, b3 = params
    B, in_dim = x.shape
    h1_dim, h2_dim, out_dim = w1.shape[0], w2.shape[0], w3.shape[0]

    # --- batch tile: large (amortize per-grid-step overhead), multiple of CHUNK,
    #     and keep >= 2 grid steps when the batch allows (v7x megacore). ---
    total_chunks = _cdiv(B, CHUNK)
    tile_chunks = max(1, min(tile_b // CHUNK, total_chunks))
    if total_chunks >= 2 and _cdiv(total_chunks, tile_chunks) < 2:
        tile_chunks = _cdiv(total_chunks, 2)
    tile_b = tile_chunks * CHUNK
    grid = (_cdiv(total_chunks, tile_chunks),)
    B_pad = grid[0] * tile_b

    # --- input: batch on the lane axis, bf16 for the MXU.  cast+transpose+pad
    #     fuse into one pass under this jit; pad skipped if B is a tile multiple.
    # TODO(synk): accept feature-major bf16 input upstream to drop this pass entirely.
    xT = x.T.astype(jnp.bfloat16)
    if B_pad != B:
        xT = jnp.pad(xT, ((0, 0), (0, B_pad - B)))

    w1b = w1.astype(jnp.bfloat16)
    w2b = w2.astype(jnp.bfloat16)
    w3t = w3.T.astype(jnp.float32)          # (h2_dim, 1): head as VPU/XLU reduction

    # Weights/biases: full-array blocks, constant index_map -> VMEM-resident
    # across all batch grid steps (no per-tile re-DMA).
    resident = lambda a: pl.BlockSpec(a.shape, lambda i: (0,) * a.ndim)

    flops = 2 * B_pad * (in_dim * h1_dim + h1_dim * h2_dim + h2_dim * out_dim)
    bytes_accessed = (B_pad * (in_dim * 2 + out_dim * 4)
                      + 2 * (w1b.size + w2b.size)
                      + 4 * (b1.size + b2.size + w3t.size + b3.size))

    outT = pl.pallas_call(
        mlp_kernel,
        out_shape=jax.ShapeDtypeStruct((out_dim, B_pad), jnp.float32),
        grid=grid,
        in_specs=[
            pl.BlockSpec((in_dim, tile_b), lambda i: (0, i)),  # activation stream
            resident(w1b), resident(b1),
            resident(w2b), resident(b2),
            resident(w3t), resident(b3),
        ],
        out_specs=pl.BlockSpec((out_dim, tile_b), lambda i: (0, i)),  # lane-dense
        compiler_params=pltpu.CompilerParams(
            dimension_semantics=("parallel",),       # batch steps shard across TCs
            vmem_limit_bytes=32 * 1024 * 1024,       # explicit budget (safe on v5e/v6e/v7x)
        ),
        cost_estimate=pl.CostEstimate(
            flops=flops, transcendentals=0, bytes_accessed=bytes_accessed),
    )(xT, w1b, b1, w2b, b2, w3t, b3)

    return outT[:, :B].T  # back to (B, 1), drop padding columns (fused under jit)


def xavier_uniform(key, fan_in, fan_out):
    """torch.nn.init.xavier_uniform_: bound = sqrt(6/(fan_in+fan_out)).
    Generated directly in PyTorch's (out, in) layout (uniform is transpose-invariant)."""
    bound = math.sqrt(6.0 / (fan_in + fan_out))
    return jax.random.uniform(key, (fan_out, fan_in), jnp.float32, -bound, bound)


def init_params(key, input_size=4, hidden_sizes=(64, 32)):
    sizes = [input_size] + list(hidden_sizes) + [1]
    keys = jax.random.split(key, len(sizes) - 1)
    params = []
    for k, fan_in, fan_out in zip(keys, sizes[:-1], sizes[1:]):
        w = xavier_uniform(k, fan_in, fan_out)          # (out, in)
        b = jnp.zeros((fan_out, 1), jnp.float32)        # (out, 1): broadcasts on lanes
        params.extend([w, b])
    return tuple(params)


def reference_forward(x, params):
    """Plain-JAX f32 reference identical to the PyTorch forward."""
    w1, b1, w2, b2, w3, b3 = params
    h = jnp.maximum(x @ w1.T + b1.T, 0.0)
    h = jnp.maximum(h @ w2.T + b2.T, 0.0)
    return h @ w3.T + b3.T


if __name__ == "__main__":
    key = jax.random.PRNGKey(0)
    k_params, k_x = jax.random.split(key)

    params = init_params(k_params, input_size=4, hidden_sizes=(64, 32))
    x = jax.random.normal(k_x, (8, 4), jnp.float32)  # batch=8, input_size=4

    y = burnout_predictor_forward(x, params)
    y = jax.block_until_ready(y)

    y_ref = reference_forward(x, params)
    assert y.shape == (8, 1), y.shape
    # bf16 matmul inputs with f32 accumulation -> bf16-level tolerance vs f32 ref.
    assert jnp.allclose(y, y_ref, atol=2e-2, rtol=2e-2), "mismatch vs reference"

    print("KERNEL_OK")
</pallas_src>

<mosaic_0001>
module attributes {stable_mosaic.version = 11 : i64} {
  func.func @mlp_kernel(%arg0: i32, %arg1: memref<4x512xbf16, #tpu.memory_space<vmem>>, %arg2: memref<64x4xbf16, #tpu.memory_space<vmem>>, %arg3: memref<64x1xf32, #tpu.memory_space<vmem>>, %arg4: memref<32x64xbf16, #tpu.memory_space<vmem>>, %arg5: memref<32x1xf32, #tpu.memory_space<vmem>>, %arg6: memref<32x1xf32, #tpu.memory_space<vmem>>, %arg7: memref<1x1xf32, #tpu.memory_space<vmem>>, %arg8: memref<1x512xf32, #tpu.memory_space<vmem>>) attributes {dimension_semantics = [#tpu.dimension_semantics<parallel>], iteration_bounds = array<i64: 1>, scalar_prefetch = 0 : i64, scratch_operands = 0 : i64, tpu.core_type = #tpu.core_type<tc>, window_params = [{transform_indices = @transform_0, window_bounds = array<i64: 4, 512>}, {pipeline_mode = #tpu.pipeline_mode<synchronous>, transform_indices = @transform_1, window_bounds = array<i64: 64, 4>}, {pipeline_mode = #tpu.pipeline_mode<synchronous>, transform_indices = @transform_2, window_bounds = array<i64: 64, 1>}, {pipeline_mode = #tpu.pipeline_mode<synchronous>, transform_indices = @transform_3, window_bounds = array<i64: 32, 64>}, {pipeline_mode = #tpu.pipeline_mode<synchronous>, transform_indices = @transform_4, window_bounds = array<i64: 32, 1>}, {pipeline_mode = #tpu.pipeline_mode<synchronous>, transform_indices = @transform_5, window_bounds = array<i64: 32, 1>}, {pipeline_mode = #tpu.pipeline_mode<synchronous>, transform_indices = @transform_6, window_bounds = array<i64: 1, 1>}, {transform_indices = @transform_7, window_bounds = array<i64: 1, 512>}]} {
    %c0 = arith.constant 0 : index
    %c0_0 = arith.constant 0 : index
    %0 = vector.load %arg2[%c0, %c0_0] : memref<64x4xbf16, #tpu.memory_space<vmem>>, vector<64x4xbf16>
    %c0_1 = arith.constant 0 : index
    %c0_2 = arith.constant 0 : index
    %1 = vector.load %arg3[%c0_1, %c0_2] : memref<64x1xf32, #tpu.memory_space<vmem>>, vector<64x1xf32>
    %c0_3 = arith.constant 0 : index
    %c0_4 = arith.constant 0 : index
    %2 = vector.load %arg4[%c0_3, %c0_4] : memref<32x64xbf16, #tpu.memory_space<vmem>>, vector<32x64xbf16>
    %c0_5 = arith.constant 0 : index
    %c0_6 = arith.constant 0 : index
    %3 = vector.load %arg5[%c0_5, %c0_6] : memref<32x1xf32, #tpu.memory_space<vmem>>, vector<32x1xf32>
    %c0_7 = arith.constant 0 : index
    %c0_8 = arith.constant 0 : index
    %4 = vector.load %arg6[%c0_7, %c0_8] : memref<32x1xf32, #tpu.memory_space<vmem>>, vector<32x1xf32>
    %c0_9 = arith.constant 0 : index
    %c0_10 = arith.constant 0 : index
    %5 = vector.load %arg7[%c0_9, %c0_10] : memref<1x1xf32, #tpu.memory_space<vmem>>, vector<1x1xf32>
    %c0_i32 = arith.constant 0 : i32
    %c512_i32 = arith.constant 512 : i32
    %6 = arith.muli %c0_i32, %c512_i32 : i32
    %7 = tpu.assume_multiple %6, 512 : i32
    %c0_11 = arith.constant 0 : index
    %8 = arith.index_cast %7 : i32 to index
    %9 = vector.load %arg1[%c0_11, %8] : memref<4x512xbf16, #tpu.memory_space<vmem>>, vector<4x512xbf16>
    %cst = arith.constant dense<0.000000e+00> : vector<64x512xf32>
    %10 = tpu.matmul %0, %9, %cst {dimension_numbers = #tpu.dot_dimension_numbers<[1], [0], [0], [1], [0, 0, 1, 1], [], []>} : vector<64x4xbf16>, vector<4x512xbf16>, vector<64x512xf32> -> vector<64x512xf32>
    %11 = vector.broadcast %1 : vector<64x1xf32> to vector<64x512xf32>
    %12 = arith.addf %10, %11 : vector<64x512xf32>
    %13 = arith.truncf %12 : vector<64x512xf32> to vector<64x512xbf16>
    %cst_12 = arith.constant 0.000000e+00 : bf16
    %14 = vector.broadcast %cst_12 : bf16 to vector<64x512xbf16>
    %15 = arith.maximumf %13, %14 : vector<64x512xbf16>
    %cst_13 = arith.constant dense<0.000000e+00> : vector<32x512xf32>
    %16 = tpu.matmul %2, %15, %cst_13 {dimension_numbers = #tpu.dot_dimension_numbers<[1], [0], [0], [1], [0, 0, 1, 1], [], []>} : vector<32x64xbf16>, vector<64x512xbf16>, vector<32x512xf32> -> vector<32x512xf32>
    %17 = vector.broadcast %3 : vector<32x1xf32> to vector<32x512xf32>
    %18 = arith.addf %16, %17 : vector<32x512xf32>
    %19 = arith.truncf %18 : vector<32x512xf32> to vector<32x512xbf16>
    %cst_14 = arith.constant 0.000000e+00 : bf16
    %20 = vector.broadcast %cst_14 : bf16 to vector<32x512xbf16>
    %21 = arith.maximumf %19, %20 : vector<32x512xbf16>
    %22 = arith.extf %21 : vector<32x512xbf16> to vector<32x512xf32>
    %23 = vector.broadcast %4 : vector<32x1xf32> to vector<32x512xf32>
    %24 = arith.mulf %23, %22 : vector<32x512xf32>
    %cst_15 = arith.constant dense<0.000000e+00> : vector<512xf32>
    %25 = vector.multi_reduction <add>, %24, %cst_15 [0] : vector<32x512xf32> to vector<512xf32>
    %26 = vector.shape_cast %25 : vector<512xf32> to vector<1x512xf32>
    %27 = vector.broadcast %5 : vector<1x1xf32> to vector<1x512xf32>
    %28 = arith.addf %26, %27 : vector<1x512xf32>
    %c0_16 = arith.constant 0 : index
    %29 = arith.index_cast %7 : i32 to index
    %30 = vector.load %arg8[%c0_16, %29] : memref<1x512xf32, #tpu.memory_space<vmem>>, vector<1x512xf32>
    tpu.vector_store %arg8[%c0_16, %29], %28 {strides = array<i32>} : memref<1x512xf32, #tpu.memory_space<vmem>>, vector<1x512xf32>,
    %c1_i32 = arith.constant 1 : i32
    return
  }
  func.func @transform_0(%arg0: i32) -> (i32, i32) {
    %c0_i32 = arith.constant 0 : i32
    %c0_i32_0 = arith.constant 0 : i32
    return %c0_i32, %arg0 : i32, i32
  }
  func.func @transform_1(%arg0: i32) -> (i32, i32) {
    %c0_i32 = arith.constant 0 : i32
    %c0_i32_0 = arith.constant 0 : i32
    %c0_i32_1 = arith.constant 0 : i32
    return %c0_i32, %c0_i32_0 : i32, i32
  }
  func.func @transform_2(%arg0: i32) -> (i32, i32) {
    %c0_i32 = arith.constant 0 : i32
    %c0_i32_0 = arith.constant 0 : i32
    %c0_i32_1 = arith.constant 0 : i32
    return %c0_i32, %c0_i32_0 : i32, i32
  }
  func.func @transform_3(%arg0: i32) -> (i32, i32) {
    %c0_i32 = arith.constant 0 : i32
    %c0_i32_0 = arith.constant 0 : i32
    %c0_i32_1 = arith.constant 0 : i32
    return %c0_i32, %c0_i32_0 : i32, i32
  }
  func.func @transform_4(%arg0: i32) -> (i32, i32) {
    %c0_i32 = arith.constant 0 : i32
    %c0_i32_0 = arith.constant 0 : i32
    %c0_i32_1 = arith.constant 0 : i32
    return %c0_i32, %c0_i32_0 : i32, i32
  }
  func.func @transform_5(%arg0: i32) -> (i32, i32) {
    %c0_i32 = arith.constant 0 : i32
    %c0_i32_0 = arith.constant 0 : i32
    %c0_i32_1 = arith.constant 0 : i32
    return %c0_i32, %c0_i32_0 : i32, i32
  }
  func.func @transform_6(%arg0: i32) -> (i32, i32) {
    %c0_i32 = arith.constant 0 : i32
    %c0_i32_0 = arith.constant 0 : i32
    %c0_i32_1 = arith.constant 0 : i32
    return %c0_i32, %c0_i32_0 : i32, i32
  }
  func.func @transform_7(%arg0: i32) -> (i32, i32) {
    %c0_i32 = arith.constant 0 : i32
    %c0_i32_0 = arith.constant 0 : i32
    return %c0_i32, %arg0 : i32, i32
  }
}

</mosaic_0001>

<llo_original>
// kernel: burnout_predictor_forward.1
$region0: #{burnout_predictor_forward.1}
  #allocation0 [shape = 'u32[]', space=smem, size = 0x4, offset = 0x4, fixed_abs, tag = 'smem constant byte address 0x4 - core index']
  #allocation1 [shape = 'u32[144,128]{1,0:T(1,128)}', space=vmem, size = 0x12000, scoped, tag = 'internal scratch']
  #allocation2 [shape = 'f32[1,1]{1,0:T(1,128)S(1)}', space=vmem, size = 0x200, scoped, tag = 'scoped memory for burnout_predictor_forward.1']
  %s0 = inlined_call_operand.vmem [shape: bf16[4,512], index: 0, kind: input, shape index: {}]
  %s1 = inlined_call_operand.vmem [shape: bf16[64,4], index: 1, kind: input, shape index: {}]
  %s2 = inlined_call_operand.vmem [shape: f32[64,1], index: 2, kind: input, shape index: {}]
  %s3 = inlined_call_operand.vmem [shape: bf16[32,64], index: 3, kind: input, shape index: {}]
  %s4 = inlined_call_operand.vmem [shape: f32[32,1], index: 4, kind: input, shape index: {}]
  %s5 = inlined_call_operand.vmem [shape: f32[32,1], index: 5, kind: input, shape index: {}]
  %s6 = inlined_call_operand.<no memory space> [shape: f32[1,1], index: 6, kind: input, shape index: {}]
  %s7 = inlined_call_operand.vmem [shape: f32[1,512], index: 7, kind: output, shape index: {}]
  %s8 = sld [smem:[#allocation0]]
  $region38: #{burnout_predictor_forward.1} parent=0
    _
  %s10 = ssub.s32 1, %s8
  %s11 = scalar_select 0, %s10, %s8
  %v12 = vstv %s6
  %13 = vst [vmem:[#allocation2] sm:$0x1] %v12
  // Predicated region
  $region2: #{burnout_predictor_forward.1} parent=0 // pred_check
    _
  $region3: #{burnout_predictor_forward.1} parent=0 // pred_check_branch
    %15 = sbr.rel (0) target = $region5
  $region4: #{burnout_predictor_forward.1} parent=0 // pred_region
    _
  $region5: #{burnout_predictor_forward.1} parent=0 // pred_fallthru
    _
  // Predicated region
  $region6: #{burnout_predictor_forward.1} parent=0 // pred_check
    _
  $region7: #{burnout_predictor_forward.1} parent=0 // pred_check_branch
    %17 = sbr.rel (0) target = $region9
  $region8: #{burnout_predictor_forward.1} parent=0 // pred_region
    _
  $region9: #{burnout_predictor_forward.1} parent=0 // pred_fallthru
    _
  // Predicated region
  $region10: #{burnout_predictor_forward.1} parent=0 // pred_check
    _
  $region11: #{burnout_predictor_forward.1} parent=0 // pred_check_branch
    %19 = sbr.rel (0) target = $region13
  $region12: #{burnout_predictor_forward.1} parent=0 // pred_region
    _
  $region13: #{burnout_predictor_forward.1} parent=0 // pred_fallthru
    _
  // Predicated region
  $region14: #{burnout_predictor_forward.1} parent=0 // pred_check
    _
  $region15: #{burnout_predictor_forward.1} parent=0 // pred_check_branch
    %21 = sbr.rel (0) target = $region17
  $region16: #{burnout_predictor_forward.1} parent=0 // pred_region
    _
  $region17: #{burnout_predictor_forward.1} parent=0 // pred_fallthru
    _
  // Predicated region
  $region18: #{burnout_predictor_forward.1} parent=0 // pred_check
    _
  $region19: #{burnout_predictor_forward.1} parent=0 // pred_check_branch
    %23 = sbr.rel (0) target = $region21
  $region20: #{burnout_predictor_forward.1} parent=0 // pred_region
    _
  $region21: #{burnout_predictor_forward.1} parent=0 // pred_fallthru
    _
  // Predicated region
  $region22: #{burnout_predictor_forward.1} parent=0 // pred_check
    _
  $region23: #{burnout_predictor_forward.1} parent=0 // pred_check_branch
    %25 = sbr.rel (0) target = $region25
  $region24: #{burnout_predictor_forward.1} parent=0 // pred_region
    _
  $region25: #{burnout_predictor_forward.1} parent=0 // pred_fallthru
    _
  // Predicated region
  $region26: #{burnout_predictor_forward.1} parent=0 // pred_check
    _
  $region27: #{burnout_predictor_forward.1} parent=0 // pred_check_branch
    %27 = sbr.rel (0) target = $region29
  $region28: #{burnout_predictor_forward.1} parent=0 // pred_region
    _
  $region29: #{burnout_predictor_forward.1} parent=0 // pred_fallthru
    _
  %v29 = vld [vmem:[%s1] sm:$0xf]
  %v30 = vld [vmem:[%s1 + $0x4] sm:$0xf]
  %v31 = vld [vmem:[%s1 + $0x8] sm:$0xf]
  %v32 = vld [vmem:[%s1 + $0xc] sm:$0xf]
  %v33 = vld [vmem:[%s1 + $0x10] sm:$0xf]
  %v34 = vld [vmem:[%s1 + $0x14] sm:$0xf]
  %v35 = vld [vmem:[%s1 + $0x18] sm:$0xf]
  %v36 = vld [vmem:[%s1 + $0x1c] sm:$0xf]
  %v37 = vld [vmem:[%s2] sm:$0xff]
  %v38 = vld [vmem:[%s2 + $0x8] sm:$0xff]
  %v39 = vld [vmem:[%s2 + $0x10] sm:$0xff]
  %v40 = vld [vmem:[%s2 + $0x18] sm:$0xff]
  %v41 = vld [vmem:[%s2 + $0x20] sm:$0xff]
  %v42 = vld [vmem:[%s2 + $0x28] sm:$0xff]
  %v43 = vld [vmem:[%s2 + $0x30] sm:$0xff]
  %v44 = vld [vmem:[%s2 + $0x38] sm:$0xff]
  %v45 = vld [vmem:[%s3] sm:$0xf]
  %v46 = vld [vmem:[%s3 + $0x4] sm:$0xf]
  %v47 = vld [vmem:[%s3 + $0x8] sm:$0xf]
  %v48 = vld [vmem:[%s3 + $0xc] sm:$0xf]
  %v49 = vld [vmem:[%s4] sm:$0xff]
  %v50 = vld [vmem:[%s4 + $0x8] sm:$0xff]
  %v51 = vld [vmem:[%s4 + $0x10] sm:$0xff]
  %v52 = vld [vmem:[%s4 + $0x18] sm:$0xff]
  %v53 = vld [vmem:[%s5] sm:$0xff]
  %v54 = vld [vmem:[%s5 + $0x8] sm:$0xff]
  %v55 = vld [vmem:[%s5 + $0x10] sm:$0xff]
  %v56 = vld [vmem:[%s5 + $0x18] sm:$0xff]
  %v57 = vld [vmem:[#allocation2] sm:$0x1]
  %v58 = vld [vmem:[%s0] sm:$0xff]
  %60 = vset.pattern.permute.xlu0 0
  %61 = vperm.xlu0 %60, %v37
  %v62 = vpop.permute.xlu0 %61
  %65 = vset.pattern.permute.xlu0 0
  %66 = vperm.xlu0 %65, %v38
  %v67 = vpop.permute.xlu0 %66
  %70 = vset.pattern.permute.xlu0 0
  %71 = vperm.xlu0 %70, %v39
  %v72 = vpop.permute.xlu0 %71
  %75 = vset.pattern.permute.xlu0 0
  %76 = vperm.xlu0 %75, %v40
  %v77 = vpop.permute.xlu0 %76
  %80 = vset.pattern.permute.xlu0 0
  %81 = vperm.xlu0 %80, %v41
  %v82 = vpop.permute.xlu0 %81
  %85 = vset.pattern.permute.xlu0 0
  %86 = vperm.xlu0 %85, %v42
  %v87 = vpop.permute.xlu0 %86
  %90 = vset.pattern.permute.xlu0 0
  %91 = vperm.xlu0 %90, %v43
  %v92 = vpop.permute.xlu0 %91
  %95 = vset.pattern.permute.xlu0 0
  %96 = vperm.xlu0 %95, %v44
  %v97 = vpop.permute.xlu0 %96
  %v107 = vunpack.c.l.b16 %v29
  %v108 = vunpack.c.l.b16 %v30
  %v109 = vunpack.c.l.b16 %v31
  %v110 = vunpack.c.l.b16 %v32
  %v111 = vunpack.c.l.b16 %v33
  %v112 = vunpack.c.l.b16 %v34
  %v113 = vunpack.c.l.b16 %v35
  %v114 = vunpack.c.l.b16 %v36
  %v115 = vpack.c.b16 %v108, %v107
  %v116 = vpack.c.b16 %v110, %v109
  %v117 = vpack.c.b16 %v112, %v111
  %v118 = vpack.c.b16 %v114, %v113
  %v120 = vcombine.high %v58, %v58
  %v122 = vunpack.c.l.s4 1983009808
  %v123 = vunpack.c.0.s8 %v122
  %v124 = vlaneseq
  %v125 = vshrl.u32 %v124, 7
  %v126 = vsub.s32 %v123, %v125
  %v127 = vrot.slane %v58, %v126
  %v129 = vunpack.c.l.s4 1983009808
  %v130 = vunpack.c.0.s8 %v129
  %v131 = vlaneseq
  %v132 = vshrl.u32 %v131, 7
  %v133 = vsub.s32 %v130, %v132
  %v134 = vrot.slane %v120, %v133
  %v135 = vcombine.high %v127, %v127
  %v136 = vcombine.high %v134, %v134
  %vm137 = vcmask 31744
  %v139 = vsel %vm137, %v115, 0
  %v142 = vsel %vm137, %v116, 0
  %v145 = vsel %vm137, %v117, 0
  %v148 = vsel %vm137, %v118, 0
  %vm150 = vcmask 1041408
  %v152 = vsel %vm150, %v127, 0
  %v155 = vsel %vm150, %v135, 0
  %v158 = vsel %vm150, %v134, 0
  %v161 = vsel %vm150, %v136, 0
  %163 = vmatprep.subr.bf16.mxu0 %v155
  %164 = vmatpush1.bf16.msra.mxu0 %v152
  %165 = vmatprep.subr.bf16.mxu0 0
  %166 = vmatpush1.bf16.msra.mxu0 0
  %167 = vmatprep.subr.bf16.mxu0 0
  %168 = vmatpush1.bf16.msra.mxu0 0
  %169 = vmatprep.subr.bf16.mxu0 0
  %170 = vmatpush1.bf16.msra.mxu0 0
  %171 = vmatprep.subr.bf16.mxu0 0
  %172 = vmatpush1.bf16.msra.mxu0 0
  %173 = vmatprep.subr.bf16.mxu0 0
  %174 = vmatpush1.bf16.msra.mxu0 0
  %175 = vmatprep.subr.bf16.mxu0 0
  %176 = vmatpush1.bf16.msra.mxu0 0
  %177 = vmatprep.subr.bf16.mxu0 0
  %178 = vmatpush1.bf16.msra.mxu0 0
  %179 = vmatprep.subr.bf16.mxu0 0
  %180 = vmatpush1.bf16.msra.mxu0 0
  %181 = vmatprep.subr.bf16.mxu0 0
  %182 = vmatpush1.bf16.msra.mxu0 0
  %183 = vmatprep.subr.bf16.mxu0 0
  %184 = vmatpush1.bf16.msra.mxu0 0
  %185 = vmatprep.subr.bf16.mxu0 0
  %186 = vmatpush1.bf16.msra.mxu0 0
  %187 = vmatprep.subr.bf16.mxu0 0
  %188 = vmatpush1.bf16.msra.mxu0 0
  %189 = vmatprep.subr.bf16.mxu0 0
  %190 = vmatpush1.bf16.msra.mxu0 0
  %191 = vmatprep.subr.bf16.mxu0 0
  %192 = vmatpush1.bf16.msra.mxu0 0
  %193 = vmatprep.subr.bf16.mxu0 0
  %194 = vmatpush1.bf16.msra.mxu0 0
  %195 = vmatprep.mubr.bf16.mxu0 0
  %196 = vmatmul.mubr.bf16.gmra.mrb[0].mxu0 %v139
  %v197 = vpop.f32.mrb[0].mxu0
  %v198 = vadd.f32 %v62, %v197
  %v199 = vpop.f32.mrb[0].mxu0
  %v200 = vadd.f32 %v62, %v199
  %v201 = vpop.f32.mrb[0].mxu0
  %v202 = vadd.f32 %v67, %v201
  %v203 = vpop.f32.mrb[0].mxu0
  %v204 = vadd.f32 %v67, %v203
  %205 = vmatprep.mubr.bf16.mxu0 0
  %206 = vmatmul.mubr.bf16.gmra.mrb[0].mxu0 %v142
  %v207 = vpop.f32.mrb[0].mxu0
  %v208 = vadd.f32 %v72, %v207
  %v209 = vpop.f32.mrb[0].mxu0
  %v210 = vadd.f32 %v72, %v209
  %v211 = vpop.f32.mrb[0].mxu0
  %v212 = vadd.f32 %v77, %v211
  %v213 = vpop.f32.mrb[0].mxu0
  %v214 = vadd.f32 %v77, %v213
  %215 = vmatprep.mubr.bf16.mxu0 0
  %216 = vmatmul.mubr.bf16.gmra.mrb[0].mxu0 %v145
  %v217 = vpop.f32.mrb[0].mxu0
  %v218 = vadd.f32 %v82, %v217
  %v219 = vpop.f32.mrb[0].mxu0
  %v220 = vadd.f32 %v82, %v219
  %v221 = vpop.f32.mrb[0].mxu0
  %v222 = vadd.f32 %v87, %v221
  %v223 = vpop.f32.mrb[0].mxu0
  %v224 = vadd.f32 %v87, %v223
  %225 = vmatprep.mubr.bf16.mxu0 0
  %226 = vmatmul.mubr.bf16.gmra.mrb[0].mxu0 %v148
  %v227 = vpop.f32.mrb[0].mxu0
  %v228 = vadd.f32 %v92, %v227
  %v229 = vpop.f32.mrb[0].mxu0
  %v230 = vadd.f32 %v92, %v229
  %v231 = vpop.f32.mrb[0].mxu0
  %v232 = vadd.f32 %v97, %v231
  %v233 = vpop.f32.mrb[0].mxu0
  %v234 = vadd.f32 %v97, %v233
  %235 = vdwg.mxu0
  %236 = vmatprep.subr.bf16.mxu0 %v161
  %237 = vmatpush1.bf16.msra.mxu0 %v158
  %238 = vmatprep.subr.bf16.mxu0 0
  %239 = vmatpush1.bf16.msra.mxu0 0
  %240 = vmatprep.subr.bf16.mxu0 0
  %241 = vmatpush1.bf16.msra.mxu0 0
  %242 = vmatprep.subr.bf16.mxu0 0
  %243 = vmatpush1.bf16.msra.mxu0 0
  %244 = vmatprep.subr.bf16.mxu0 0
  %245 = vmatpush1.bf16.msra.mxu0 0
  %246 = vmatprep.subr.bf16.mxu0 0
  %247 = vmatpush1.bf16.msra.mxu0 0
  %248 = vmatprep.subr.bf16.mxu0 0
  %249 = vmatpush1.bf16.msra.mxu0 0
  %250 = vmatprep.subr.bf16.mxu0 0
  %251 = vmatpush1.bf16.msra.mxu0 0
  %252 = vmatprep.subr.bf16.mxu0 0
  %253 = vmatpush1.bf16.msra.mxu0 0
  %254 = vmatprep.subr.bf16.mxu0 0
  %255 = vmatpush1.bf16.msra.mxu0 0
  %256 = vmatprep.subr.bf16.mxu0 0
  %257 = vmatpush1.bf16.msra.mxu0 0
  %258 = vmatprep.subr.bf16.mxu0 0
  %259 = vmatpush1.bf16.msra.mxu0 0
  %260 = vmatprep.subr.bf16.mxu0 0
  %261 = vmatpush1.bf16.msra.mxu0 0
  %262 = vmatprep.subr.bf16.mxu0 0
  %263 = vmatpush1.bf16.msra.mxu0 0
  %264 = vmatprep.subr.bf16.mxu0 0
  %265 = vmatpush1.bf16.msra.mxu0 0
  %266 = vmatprep.subr.bf16.mxu0 0
  %267 = vmatpush1.bf16.msra.mxu0 0
  %268 = vmatprep.mubr.bf16.mxu0 0
  %269 = vmatmul.mubr.bf16.gmra.mrb[0].mxu0 %v139
  %v270 = vpop.f32.mrb[0].mxu0
  %v271 = vadd.f32 %v62, %v270
  %v272 = vpop.f32.mrb[0].mxu0
  %v273 = vadd.f32 %v62, %v272
  %v274 = vpop.f32.mrb[0].mxu0
  %v275 = vadd.f32 %v67, %v274
  %v276 = vpop.f32.mrb[0].mxu0
  %v277 = vadd.f32 %v67, %v276
  %278 = vmatprep.mubr.bf16.mxu0 0
  %279 = vmatmul.mubr.bf16.gmra.mrb[0].mxu0 %v142
  %v280 = vpop.f32.mrb[0].mxu0
  %v281 = vadd.f32 %v72, %v280
  %v282 = vpop.f32.mrb[0].mxu0
  %v283 = vadd.f32 %v72, %v282
  %v284 = vpop.f32.mrb[0].mxu0
  %v285 = vadd.f32 %v77, %v284
  %v286 = vpop.f32.mrb[0].mxu0
  %v287 = vadd.f32 %v77, %v286
  %288 = vmatprep.mubr.bf16.mxu0 0
  %289 = vmatmul.mubr.bf16.gmra.mrb[0].mxu0 %v145
  %v290 = vpop.f32.mrb[0].mxu0
  %v291 = vadd.f32 %v82, %v290
  %v292 = vpop.f32.mrb[0].mxu0
  %v293 = vadd.f32 %v82, %v292
  %v294 = vpop.f32.mrb[0].mxu0
  %v295 = vadd.f32 %v87, %v294
  %v296 = vpop.f32.mrb[0].mxu0
  %v297 = vadd.f32 %v87, %v296
  %298 = vmatprep.mubr.bf16.mxu0 0
  %299 = vmatmul.mubr.bf16.gmra.mrb[0].mxu0 %v148
  %v300 = vpop.f32.mrb[0].mxu0
  %v301 = vadd.f32 %v92, %v300
  %v302 = vpop.f32.mrb[0].mxu0
  %v303 = vadd.f32 %v92, %v302
  %v304 = vpop.f32.mrb[0].mxu0
  %v305 = vadd.f32 %v97, %v304
  %v306 = vpop.f32.mrb[0].mxu0
  %v307 = vadd.f32 %v97, %v306
  %308 = vdwg.mxu0
  %v309 = vpack.c.bf16 %v202, %v198
  %v310 = vpack.c.bf16 %v204, %v200
  %v311 = vpack.c.bf16 %v275, %v271
  %v312 = vpack.c.bf16 %v277, %v273
  %v313 = vpack.c.bf16 %v212, %v208
  %v314 = vpack.c.bf16 %v214, %v210
  %v315 = vpack.c.bf16 %v285, %v281
  %v316 = vpack.c.bf16 %v287, %v283
  %v317 = vpack.c.bf16 %v222, %v218
  %v318 = vpack.c.bf16 %v224, %v220
  %v319 = vpack.c.bf16 %v295, %v291
  %v320 = vpack.c.bf16 %v297, %v293
  %v321 = vpack.c.bf16 %v232, %v228
  %v322 = vpack.c.bf16 %v234, %v230
  %v323 = vpack.c.bf16 %v305, %v301
  %v324 = vpack.c.bf16 %v307, %v303
  %v325 = vmax.bf16 %v309, 0
  %v326 = vmax.bf16 %v310, 0
  %v327 = vmax.bf16 %v311, 0
  %v328 = vmax.bf16 %v312, 0
  %v329 = vmax.bf16 %v313, 0
  %v330 = vmax.bf16 %v314, 0
  %v331 = vmax.bf16 %v315, 0
  %v332 = vmax.bf16 %v316, 0
  %v333 = vmax.bf16 %v317, 0
  %v334 = vmax.bf16 %v318, 0
  %v335 = vmax.bf16 %v319, 0
  %v336 = vmax.bf16 %v320, 0
  %v337 = vmax.bf16 %v321, 0
  %v338 = vmax.bf16 %v322, 0
  %v339 = vmax.bf16 %v323, 0
  %v340 = vmax.bf16 %v324, 0
  %342 = vset.pattern.permute.xlu0 0
  %343 = vperm.xlu0 %342, %v49
  %v344 = vpop.permute.xlu0 %343
  %347 = vset.pattern.permute.xlu0 0
  %348 = vperm.xlu0 %347, %v50
  %v349 = vpop.permute.xlu0 %348
  %352 = vset.pattern.permute.xlu0 0
  %353 = vperm.xlu0 %352, %v51
  %v354 = vpop.permute.xlu0 %353
  %357 = vset.pattern.permute.xlu0 0
  %358 = vperm.xlu0 %357, %v52
  %v359 = vpop.permute.xlu0 %358
  %v365 = vunpack.c.l.b16 %v45
  %v366 = vunpack.c.l.b16 %v46
  %v367 = vunpack.c.l.b16 %v47
  %v368 = vunpack.c.l.b16 %v48
  %v369 = vpack.c.b16 %v366, %v365
  %v370 = vpack.c.b16 %v368, %v367
  %vm371 = vcmask 523264
  %v373 = vsel %vm371, %v369, 0
  %v376 = vsel %vm371, %v370, 0
  %378 = vmatprep.subr.bf16.mxu0 %v326
  %379 = vmatpush1.bf16.msra.mxu0 %v325
  %380 = vmatprep.subr.bf16.mxu0 %v330
  %381 = vmatpush1.bf16.msra.mxu0 %v329
  %382 = vmatprep.subr.bf16.mxu0 %v334
  %383 = vmatpush1.bf16.msra.mxu0 %v333
  %384 = vmatprep.subr.bf16.mxu0 %v338
  %385 = vmatpush1.bf16.msra.mxu0 %v337
  %386 = vmatprep.subr.bf16.mxu0 0
  %387 = vmatpush1.bf16.msra.mxu0 0
  %388 = vmatprep.subr.bf16.mxu0 0
  %389 = vmatpush1.bf16.msra.mxu0 0
  %390 = vmatprep.subr.bf16.mxu0 0
  %391 = vmatpush1.bf16.msra.mxu0 0
  %392 = vmatprep.subr.bf16.mxu0 0
  %393 = vmatpush1.bf16.msra.mxu0 0
  %394 = vmatprep.subr.bf16.mxu0 0
  %395 = vmatpush1.bf16.msra.mxu0 0
  %396 = vmatprep.subr.bf16.mxu0 0
  %397 = vmatpush1.bf16.msra.mxu0 0
  %398 = vmatprep.subr.bf16.mxu0 0
  %399 = vmatpush1.bf16.msra.mxu0 0
  %400 = vmatprep.subr.bf16.mxu0 0
  %401 = vmatpush1.bf16.msra.mxu0 0
  %402 = vmatprep.subr.bf16.mxu0 0
  %403 = vmatpush1.bf16.msra.mxu0 0
  %404 = vmatprep.subr.bf16.mxu0 0
  %405 = vmatpush1.bf16.msra.mxu0 0
  %406 = vmatprep.subr.bf16.mxu0 0
  %407 = vmatpush1.bf16.msra.mxu0 0
  %408 = vmatprep.subr.bf16.mxu0 0
  %409 = vmatpush1.bf16.msra.mxu0 0
  %410 = vmatprep.mubr.bf16.mxu0 0
  %411 = vmatmul.mubr.bf16.gmra.mrb[0].mxu0 %v373
  %v412 = vpop.f32.mrb[0].mxu0
  %v413 = vadd.f32 %v344, %v412
  %v414 = vpop.f32.mrb[0].mxu0
  %v415 = vadd.f32 %v344, %v414
  %v416 = vpop.f32.mrb[0].mxu0
  %v417 = vadd.f32 %v349, %v416
  %v418 = vpop.f32.mrb[0].mxu0
  %v419 = vadd.f32 %v349, %v418
  %420 = vmatprep.mubr.bf16.mxu0 0
  %421 = vmatmul.mubr.bf16.gmra.mrb[0].mxu0 %v376
  %v422 = vpop.f32.mrb[0].mxu0
  %v423 = vadd.f32 %v354, %v422
  %v424 = vpop.f32.mrb[0].mxu0
  %v425 = vadd.f32 %v354, %v424
  %v426 = vpop.f32.mrb[0].mxu0
  %v427 = vadd.f32 %v359, %v426
  %v428 = vpop.f32.mrb[0].mxu0
  %v429 = vadd.f32 %v359, %v428
  %430 = vdwg.mxu0
  %431 = vmatprep.subr.bf16.mxu0 %v328
  %432 = vmatpush1.bf16.msra.mxu0 %v327
  %433 = vmatprep.subr.bf16.mxu0 %v332
  %434 = vmatpush1.bf16.msra.mxu0 %v331
  %435 = vmatprep.subr.bf16.mxu0 %v336
  %436 = vmatpush1.bf16.msra.mxu0 %v335
  %437 = vmatprep.subr.bf16.mxu0 %v340
  %438 = vmatpush1.bf16.msra.mxu0 %v339
  %439 = vmatprep.subr.bf16.mxu0 0
  %440 = vmatpush1.bf16.msra.mxu0 0
  %441 = vmatprep.subr.bf16.mxu0 0
  %442 = vmatpush1.bf16.msra.mxu0 0
  %443 = vmatprep.subr.bf16.mxu0 0
  %444 = vmatpush1.bf16.msra.mxu0 0
  %445 = vmatprep.subr.bf16.mxu0 0
  %446 = vmatpush1.bf16.msra.mxu0 0
  %447 = vmatprep.subr.bf16.mxu0 0
  %448 = vmatpush1.bf16.msra.mxu0 0
  %449 = vmatprep.subr.bf16.mxu0 0
  %450 = vmatpush1.bf16.msra.mxu0 0
  %451 = vmatprep.subr.bf16.mxu0 0
  %452 = vmatpush1.bf16.msra.mxu0 0
  %453 = vmatprep.subr.bf16.mxu0 0
  %454 = vmatpush1.bf16.msra.mxu0 0
  %455 = vmatprep.subr.bf16.mxu0 0
  %456 = vmatpush1.bf16.msra.mxu0 0
  %457 = vmatprep.subr.bf16.mxu0 0
  %458 = vmatpush1.bf16.msra.mxu0 0
  %459 = vmatprep.subr.bf16.mxu0 0
  %460 = vmatpush1.bf16.msra.mxu0 0
  %461 = vmatprep.subr.bf16.mxu0 0
  %462 = vmatpush1.bf16.msra.mxu0 0
  %463 = vmatprep.mubr.bf16.mxu0 0
  %464 = vmatmul.mubr.bf16.gmra.mrb[0].mxu0 %v373
  %v465 = vpop.f32.mrb[0].mxu0
  %v466 = vadd.f32 %v344, %v465
  %v467 = vpop.f32.mrb[0].mxu0
  %v468 = vadd.f32 %v344, %v467
  %v469 = vpop.f32.mrb[0].mxu0
  %v470 = vadd.f32 %v349, %v469
  %v471 = vpop.f32.mrb[0].mxu0
  %v472 = vadd.f32 %v349, %v471
  %473 = vmatprep.mubr.bf16.mxu0 0
  %474 = vmatmul.mubr.bf16.gmra.mrb[0].mxu0 %v376
  %v475 = vpop.f32.mrb[0].mxu0
  %v476 = vadd.f32 %v354, %v475
  %v477 = vpop.f32.mrb[0].mxu0
  %v478 = vadd.f32 %v354, %v477
  %v479 = vpop.f32.mrb[0].mxu0
  %v480 = vadd.f32 %v359, %v479
  %v481 = vpop.f32.mrb[0].mxu0
  %v482 = vadd.f32 %v359, %v481
  %483 = vdwg.mxu0
  %v484 = vpack.c.bf16 %v417, %v413
  %v485 = vpack.c.bf16 %v419, %v415
  %v486 = vpack.c.bf16 %v470, %v466
  %v487 = vpack.c.bf16 %v472, %v468
  %v488 = vpack.c.bf16 %v427, %v423
  %v489 = vpack.c.bf16 %v429, %v425
  %v490 = vpack.c.bf16 %v480, %v476
  %v491 = vpack.c.bf16 %v482, %v478
  %v492 = vmax.bf16 %v484, 0
  %v493 = vmax.bf16 %v485, 0
  %v494 = vmax.bf16 %v486, 0
  %v495 = vmax.bf16 %v487, 0
  %v496 = vmax.bf16 %v488, 0
  %v497 = vmax.bf16 %v489, 0
  %v498 = vmax.bf16 %v490, 0
  %v499 = vmax.bf16 %v491, 0
  %v500 = vunpack.c.l.bf16 %v492
  %v501 = vunpack.c.l.bf16 %v493
  %v502 = vunpack.c.l.bf16 %v494
  %v503 = vunpack.c.l.bf16 %v495
  %v504 = vunpack.c.h.bf16 %v492
  %v505 = vunpack.c.h.bf16 %v493
  %v506 = vunpack.c.h.bf16 %v494
  %v507 = vunpack.c.h.bf16 %v495
  %v508 = vunpack.c.l.bf16 %v496
  %v509 = vunpack.c.l.bf16 %v497
  %v510 = vunpack.c.l.bf16 %v498
  %v511 = vunpack.c.l.bf16 %v499
  %v512 = vunpack.c.h.bf16 %v496
  %v513 = vunpack.c.h.bf16 %v497
  %v514 = vunpack.c.h.bf16 %v498
  %v515 = vunpack.c.h.bf16 %v499
  %517 = vset.pattern.permute.xlu0 0
  %518 = vperm.xlu0 %517, %v53
  %v519 = vpop.permute.xlu0 %518
  %522 = vset.pattern.permute.xlu0 0
  %523 = vperm.xlu0 %522, %v54
  %v524 = vpop.permute.xlu0 %523
  %527 = vset.pattern.permute.xlu0 0
  %528 = vperm.xlu0 %527, %v55
  %v529 = vpop.permute.xlu0 %528
  %532 = vset.pattern.permute.xlu0 0
  %533 = vperm.xlu0 %532, %v56
  %v534 = vpop.permute.xlu0 %533
  %v536 = vmul.f32 %v519, %v500
  %v537 = vmul.f32 %v519, %v501
  %v538 = vmul.f32 %v519, %v502
  %v539 = vmul.f32 %v519, %v503
  %v540 = vmul.f32 %v524, %v504
  %v541 = vmul.f32 %v524, %v505
  %v542 = vmul.f32 %v524, %v506
  %v543 = vmul.f32 %v524, %v507
  %v544 = vmul.f32 %v529, %v508
  %v545 = vmul.f32 %v529, %v509
  %v546 = vmul.f32 %v529, %v510
  %v547 = vmul.f32 %v529, %v511
  %v548 = vmul.f32 %v534, %v512
  %v549 = vmul.f32 %v534, %v513
  %v550 = vmul.f32 %v534, %v514
  %v551 = vmul.f32 %v534, %v515
  %v552 = vadd.f32 %v536, %v540
  %v553 = vadd.f32 %v552, %v544
  %v554 = vadd.f32 %v553, %v548
  %v555 = vrot.slane %v554, 4
  %v556 = vadd.f32 %v554, %v555
  %v557 = vrot.slane %v556, 2
  %v558 = vadd.f32 %v556, %v557
  %v559 = vrot.slane %v558, 1
  %v560 = vadd.f32 %v558, %v559
  %v561 = vadd.f32 %v537, %v541
  %v562 = vadd.f32 %v561, %v545
  %v563 = vadd.f32 %v562, %v549
  %v564 = vrot.slane %v563, 4
  %v565 = vadd.f32 %v563, %v564
  %v566 = vrot.slane %v565, 2
  %v567 = vadd.f32 %v565, %v566
  %v568 = vrot.slane %v567, 1
  %v569 = vadd.f32 %v567, %v568
  %v570 = vadd.f32 %v538, %v542
  %v571 = vadd.f32 %v570, %v546
  %v572 = vadd.f32 %v571, %v550
  %v573 = vrot.slane %v572, 4
  %v574 = vadd.f32 %v572, %v573
  %v575 = vrot.slane %v574, 2
  %v576 = vadd.f32 %v574, %v575
  %v577 = vrot.slane %v576, 1
  %v578 = vadd.f32 %v576, %v577
  %v579 = vadd.f32 %v539, %v543
  %v580 = vadd.f32 %v579, %v547
  %v581 = vadd.f32 %v580, %v551
  %v582 = vrot.slane %v581, 4
  %v583 = vadd.f32 %v581, %v582
  %v584 = vrot.slane %v583, 2
  %v585 = vadd.f32 %v583, %v584
  %v586 = vrot.slane %v585, 1
  %v587 = vadd.f32 %v585, %v586
  %589 = vset.pattern.permute.xlu0 0
  %590 = vperm.xlu0 %589, %v57
  %v591 = vpop.permute.xlu0 %590
  %v593 = vlaneseq
  %v594 = vshrl.u32 %v593, 7
  %v595 = vsub.s32 0, %v594
  %v596 = vrot.slane %v591, %v595
  %v597 = vadd.f32 %v560, %v596
  %v598 = vadd.f32 %v569, %v596
  %v599 = vadd.f32 %v578, %v596
  %v600 = vadd.f32 %v587, %v596
  %v605 = vcombine.low %v597, %v598
  %v606 = vcombine.low %v599, %v600
  %v608 = vunpack.c.l.s4 1966171168
  %v609 = vunpack.c.0.s8 %v608
  %v610 = vlaneseq
  %v611 = vshrl.u32 %v610, 7
  %v612 = vsub.s32 %v609, %v611
  %v613 = vrot.slane %v605, %v612
  %v615 = vunpack.c.l.s4 1966171168
  %v616 = vunpack.c.0.s8 %v615
  %v617 = vlaneseq
  %v618 = vshrl.u32 %v617, 7
  %v619 = vsub.s32 %v616, %v618
  %v620 = vrot.slane %v606, %v619
  %v621 = vcombine.low %v613, %v620
  %v623 = vunpack.c.l.s4 1966171168
  %v624 = vunpack.c.0.s8 %v623
  %v625 = vlaneseq
  %v626 = vshrl.u32 %v625, 7
  %v627 = vsub.s32 %v624, %v626
  %v628 = vrot.slane %v621, %v627
  %v630 = vlaneseq
  %vm631 = vcmp.ge.s32.totalorder %v630, 0
  %vm632 = vcmp.lt.s32.totalorder %v630, 512
  %vm633 = vmand %vm631, %vm632
  %634 = vst.msk [vmem:[%s7] sm:$0xf] %vm633, %v628
  // Predicated region
  $region30: #{burnout_predictor_forward.1} parent=0 // pred_check
    _
  $region31: #{burnout_predictor_forward.1} parent=0 // pred_check_branch
    %636 = sbr.rel (0) target = $region33
  $region32: #{burnout_predictor_forward.1} parent=0 // pred_region
    _
  $region33: #{burnout_predictor_forward.1} parent=0 // pred_fallthru
    _
  // Predicated region
  $region34: #{burnout_predictor_forward.1} parent=0 // pred_check
    _
  $region35: #{burnout_predictor_forward.1} parent=0 // pred_check_branch
    %638 = sbr.rel (0) target = $region37
  $region36: #{burnout_predictor_forward.1} parent=0 // pred_region
    _
  $region37: #{burnout_predictor_forward.1} parent=0 // pred_fallthru
    _

</llo_original>
